<compile_context>
chip_gen: v7x
topology: tpu7x:2x2x1
jax: 0.10.0
libtpu: 0.0.40
codegen_flags: <defaults>
</compile_context>

<pallas_src>
import functools

import jax
import jax.numpy as jnp
from jax.experimental import pallas as pl
from jax.experimental.pallas import tpu as pltpu

EPS = 1e-5
_LANES = 128
_CHUNK_ROWS = 512                        # inner compute chunk (rows of 128 lanes)
_PER_INPUT_TILE_BYTES = 4 * 1024 * 1024  # target DMA tile per input per buffer


def _round_up(x, m):
    return (x + m - 1) // m * m


def _vmem_budget():
    """Returns (vmem_limit_bytes for the compiler, per-input DMA tile bytes)."""
    try:
        info = pltpu.get_tpu_info()
        cap = int(getattr(info, "vmem_capacity_bytes", 0)) or 64 * 1024 * 1024
    except Exception:          # query unavailable -> assume smallest (v7x) VMEM
        cap = 64 * 1024 * 1024
    limit = min(cap // 2, 64 * 1024 * 1024)    # half of physical VMEM, <=64 MiB
    per_input_tile = min(_PER_INPUT_TILE_BYTES, limit // 8)
    return limit, per_input_tile


def _loss_wrapper_kernel(o_ref, t_ref, loss_ref, acc_tt, acc_dd, acc_d, *,
                         tile_rows, chunk_rows, total_rows, needs_mask,
                         bc_padded, w_esr, w_dc, inv_n, inv_t, inv_bc):
    """Gridded reduction kernel.

    o_ref, t_ref : VMEM (tile_rows, 128) tiles of the [rows, 128] flat slabs
    loss_ref     : SMEM (1, 1) f32 scalar output
    acc_tt/dd/d  : VMEM (8, 128) f32 vector accumulators (t^2, (t-o)^2, t-o)
    """
    i = pl.program_id(0)

    @pl.when(i == 0)
    def _init():
        acc_tt[...] = jnp.zeros_like(acc_tt)
        acc_dd[...] = jnp.zeros_like(acc_dd)
        acc_d[...] = jnp.zeros_like(acc_d)

    if needs_mask:
        # Row ids within one chunk; hoisted out of the chunk loop (broadcasts
        # are not CSE'd across loop iterations).
        rid = jax.lax.broadcasted_iota(jnp.int32, (chunk_rows, _LANES), 0)
        rows_left = total_rows - i * tile_rows

    def fold8(x):
        # (chunk_rows, 128) -> (8, 128) by summing whole vregs: pure VPU adds,
        # no cross-lane/sublane XLU work inside the streaming loop.
        return jnp.sum(x.reshape(chunk_rows // 8, 8, _LANES), axis=0)

    # Static unroll: slices stay static, per-chunk temporaries stay small, so
    # the large DMA tile never materializes whole-tile f32 intermediates.
    for c in range(tile_rows // chunk_rows):
        o = o_ref[pl.ds(c * chunk_rows, chunk_rows), :].astype(jnp.float32)
        t = t_ref[pl.ds(c * chunk_rows, chunk_rows), :].astype(jnp.float32)
        if needs_mask:
            valid = rid < (rows_left - c * chunk_rows)
            o = jnp.where(valid, o, 0.0)
            t = jnp.where(valid, t, 0.0)
        d = t - o
        acc_tt[...] += fold8(t * t)
        acc_dd[...] += fold8(d * d)
        acc_d[...] += fold8(d)

    @pl.when(i == pl.num_programs(0) - 1)
    def _finalize():
        inv_energy = 1.0 / (jnp.sum(acc_tt[...]) * inv_n + EPS)
        esr = jnp.sum(acc_dd[...]) * inv_n * inv_energy

        # Per-lane sums of (target - output); lane l holds flat channel
        # (l % bc_padded).  Fold lane groups with log2(128/bc) rotations.
        per_lane = jnp.sum(acc_d[...], axis=0, keepdims=True)        # (1, 128)
        group = per_lane
        shift = bc_padded
        while shift < _LANES:
            group = group + pltpu.roll(group, shift=shift, axis=1)
            shift *= 2
        # group[0, l] = S_{l % bc}; sum_l per_lane[l]*group[l] = sum_bc S_bc^2
        dc = jnp.sum(per_lane * group) * (inv_t * inv_t) * inv_bc * inv_energy

        loss_ref[0, 0] = w_esr * esr + w_dc * dc


def loss_wrapper_forward(output, target, loss_factors, *,
                         per_input_tile_bytes=None, max_tile_rows=None):
    """output, target: [seq_len, batch, channels] (any trailing shape);
    loss_factors: 2 weights (w_ESR, w_DC) — module constants, baked in."""
    assert output.shape == target.shape, (output.shape, target.shape)
    w_esr = float(loss_factors[0])
    w_dc = float(loss_factors[1])

    seq_len = int(output.shape[0])
    bc = 1
    for s in output.shape[1:]:
        bc *= int(s)
    if bc > _LANES:
        # TODO(synk): batch*channels > 128 needs a different lane->channel map.
        raise NotImplementedError("batch * channels must be <= 128")

    o2 = output.reshape(seq_len, bc)
    t2 = target.reshape(seq_len, bc)

    # The in-kernel DC reduction maps lane -> flat channel via (lane %
    # bc_padded), which needs bc_padded | 128.  Pad channels to the next power
    # of two if needed (padded channels are zero -> contribute nothing).
    bcp = bc if _LANES % bc == 0 else int(pl.next_power_of_2(bc))
    if bcp != bc:
        o2 = jnp.pad(o2, ((0, 0), (0, bcp - bc)))
        t2 = jnp.pad(t2, ((0, 0), (0, bcp - bc)))

    itemsize = jnp.dtype(output.dtype).itemsize
    sub = max(8, 32 // itemsize)         # native sublane tile: 8 f32 / 16 bf16

    # Transpose-free lane-dense view: flat [T*BCp] -> [rows, 128].  Zero pad
    # (a copy) only when T*BCp is not already 128-aligned or is tiny.
    n = seq_len * bcp
    n_pad = max(_round_up(n, _LANES), sub * _LANES)
    flat_o = o2.reshape(-1)
    flat_t = t2.reshape(-1)
    if n_pad != n:
        flat_o = jnp.pad(flat_o, (0, n_pad - n))
        flat_t = jnp.pad(flat_t, (0, n_pad - n))
    rows = n_pad // _LANES
    o_rows = flat_o.reshape(rows, _LANES)
    t_rows = flat_t.reshape(rows, _LANES)

    # VMEM-budgeted, dtype-aware tile size (2 inputs x 2 pipeline buffers).
    vmem_limit, tile_bytes = _vmem_budget()
    if per_input_tile_bytes is not None:
        tile_bytes = per_input_tile_bytes
    rows_budget = max(sub, tile_bytes // (_LANES * itemsize))
    if max_tile_rows is not None:
        rows_budget = min(rows_budget, max_tile_rows)
    tile_rows = max(sub, (min(rows_budget, rows) // sub) * sub)
    chunk_rows = min(_CHUNK_ROWS, tile_rows)
    tile_rows = (tile_rows // chunk_rows) * chunk_rows
    num_tiles = pl.cdiv(rows, tile_rows)
    needs_mask = (rows % tile_rows) != 0   # only the last tile can overhang

    kernel = functools.partial(
        _loss_wrapper_kernel,
        tile_rows=tile_rows, chunk_rows=chunk_rows, total_rows=rows,
        needs_mask=needs_mask, bc_padded=bcp,
        w_esr=w_esr, w_dc=w_dc,
        inv_n=1.0 / float(seq_len * bc),   # true element counts (ignore pads)
        inv_t=1.0 / float(seq_len),
        inv_bc=1.0 / float(bc))

    out = pl.pallas_call(
        kernel,
        out_shape=jax.ShapeDtypeStruct((1, 1), jnp.float32),
        grid_spec=pltpu.PrefetchScalarGridSpec(
            num_scalar_prefetch=0,
            grid=(num_tiles,),
            in_specs=[
                pl.BlockSpec((tile_rows, _LANES), lambda i: (i, 0)),  # output
                pl.BlockSpec((tile_rows, _LANES), lambda i: (i, 0)),  # target
            ],
            out_specs=pl.BlockSpec(memory_space=pltpu.MemorySpace.SMEM),
            scratch_shapes=[
                pltpu.VMEM((8, _LANES), jnp.float32),   # sum target^2
                pltpu.VMEM((8, _LANES), jnp.float32),   # sum (target-output)^2
                pltpu.VMEM((8, _LANES), jnp.float32),   # per-lane sum (t - o)
            ],
        ),
        compiler_params=pltpu.CompilerParams(
            dimension_semantics=("arbitrary",),          # carried reduction
            vmem_limit_bytes=vmem_limit,
        ),
        cost_estimate=pl.CostEstimate(
            flops=6 * n, transcendentals=0,
            bytes_accessed=2 * n_pad * itemsize + 4),
    )(o_rows, t_rows)
    return out[0, 0]


def loss_wrapper_reference(output, target, loss_factors):
    """Pure-JAX reference mirroring the PyTorch LossWrapper forward."""
    o = output.astype(jnp.float32)
    t = target.astype(jnp.float32)
    energy = jnp.mean(t * t) + EPS
    esr = jnp.mean((t - o) ** 2) / energy
    dc = jnp.mean((jnp.mean(t, axis=0) - jnp.mean(o, axis=0)) ** 2) / energy
    f = jnp.asarray(loss_factors, jnp.float32)
    return f[0] * esr + f[1] * dc


if __name__ == "__main__":
    # "Module init": LossWrapper(losses={'ESR': 0.75, 'DC': 0.25}, pre_filt=None)
    loss_factors = jnp.array([0.75, 0.25], dtype=jnp.float32)
    key = jax.random.PRNGKey(0)

    def run_case(case_idx, seq_len, batch, channels, dtype, rtol, **kw):
        k1, k2 = jax.random.split(jax.random.fold_in(key, case_idx))
        shape = (seq_len, batch, channels)
        output = jax.random.normal(k1, shape, dtype=jnp.float32).astype(dtype)
        target = (0.8 * jax.random.normal(k2, shape, dtype=jnp.float32)
                  + 0.05).astype(dtype)
        got = loss_wrapper_forward(output, target, loss_factors, **kw)
        got = jax.block_until_ready(got)
        want = loss_wrapper_reference(output, target, loss_factors)
        if not jnp.allclose(got, want, rtol=rtol, atol=1e-6):
            raise AssertionError(
                f"case {case_idx}: kernel={float(got)!r} ref={float(want)!r}")

    # 128-aligned: zero-copy layout, single tile (init + finalize same step).
    run_case(0, 4096, 2, 1, jnp.float32, 1e-4)
    # Ragged T*BC: tail zero-pad + multi-tile grid + ragged-row in-kernel mask.
    run_case(1, 3000, 2, 1, jnp.float32, 1e-4, max_tile_rows=16)
    # Non-power-of-two batch*channels -> channel pad, lane groups mod 4.
    run_case(2, 2000, 3, 1, jnp.float32, 1e-4, max_tile_rows=16)
    # bf16 inputs streamed as bf16 (16-row sublane tiles), f32 accumulation.
    run_case(3, 2048, 2, 2, jnp.bfloat16, 2e-3, max_tile_rows=32)

    # TODO(synk): pre_filt (PreEmph/FIRFilter conv) and the ESR pooling branch
    # are not exercised — LossWrapper defaults use pre_filt=None, pooling=False.
    print("KERNEL_OK")
</pallas_src>

<mosaic_0001>
module attributes {stable_mosaic.version = 11 : i64} {
  func.func @_loss_wrapper_kernel(%arg0: i32, %arg1: memref<64x128xf32, #tpu.memory_space<vmem>>, %arg2: memref<64x128xf32, #tpu.memory_space<vmem>>, %arg3: memref<1x1xf32, #tpu.memory_space<smem>>, %arg4: memref<8x128xf32, #tpu.memory_space<vmem>>, %arg5: memref<8x128xf32, #tpu.memory_space<vmem>>, %arg6: memref<8x128xf32, #tpu.memory_space<vmem>>) attributes {dimension_semantics = [#tpu.dimension_semantics<arbitrary>], iteration_bounds = array<i64: 1>, scalar_prefetch = 0 : i64, scratch_operands = 3 : i64, tpu.core_type = #tpu.core_type<tc>, window_params = [{transform_indices = @transform_0, window_bounds = array<i64: 64, 128>}, {transform_indices = @transform_1, window_bounds = array<i64: 64, 128>}, {transform_indices = @transform_2, window_bounds = array<i64: 1, 1>}]} {
    %c0_i32 = arith.constant 0 : i32
    %0 = arith.cmpi eq, %arg0, %c0_i32 : i32
    %1 = arith.extui %0 : i1 to i32
    %c0_i32_0 = arith.constant 0 : i32
    %2 = arith.cmpi ne, %1, %c0_i32_0 : i32
    scf.if %2 {
      %cst_20 = arith.constant 0.000000e+00 : f32
      %26 = vector.broadcast %cst_20 : f32 to vector<8x128xf32>
      %c0_21 = arith.constant 0 : index
      %c0_22 = arith.constant 0 : index
      %27 = vector.load %arg4[%c0_21, %c0_22] : memref<8x128xf32, #tpu.memory_space<vmem>>, vector<8x128xf32>
      tpu.vector_store %arg4[%c0_21, %c0_22], %26 {strides = array<i32>} : memref<8x128xf32, #tpu.memory_space<vmem>>, vector<8x128xf32>,
      %cst_23 = arith.constant 0.000000e+00 : f32
      %28 = vector.broadcast %cst_23 : f32 to vector<8x128xf32>
      %c0_24 = arith.constant 0 : index
      %c0_25 = arith.constant 0 : index
      %29 = vector.load %arg5[%c0_24, %c0_25] : memref<8x128xf32, #tpu.memory_space<vmem>>, vector<8x128xf32>
      tpu.vector_store %arg5[%c0_24, %c0_25], %28 {strides = array<i32>} : memref<8x128xf32, #tpu.memory_space<vmem>>, vector<8x128xf32>,
      %cst_26 = arith.constant 0.000000e+00 : f32
      %30 = vector.broadcast %cst_26 : f32 to vector<8x128xf32>
      %c0_27 = arith.constant 0 : index
      %c0_28 = arith.constant 0 : index
      %31 = vector.load %arg6[%c0_27, %c0_28] : memref<8x128xf32, #tpu.memory_space<vmem>>, vector<8x128xf32>
      tpu.vector_store %arg6[%c0_27, %c0_28], %30 {strides = array<i32>} : memref<8x128xf32, #tpu.memory_space<vmem>>, vector<8x128xf32>,
    } else {
    }
    %c0 = arith.constant 0 : index
    %c0_1 = arith.constant 0 : index
    %3 = vector.load %arg1[%c0, %c0_1] : memref<64x128xf32, #tpu.memory_space<vmem>>, vector<64x128xf32>
    %c0_2 = arith.constant 0 : index
    %c0_3 = arith.constant 0 : index
    %4 = vector.load %arg2[%c0_2, %c0_3] : memref<64x128xf32, #tpu.memory_space<vmem>>, vector<64x128xf32>
    %5 = arith.subf %4, %3 : vector<64x128xf32>
    %c0_4 = arith.constant 0 : index
    %c0_5 = arith.constant 0 : index
    %6 = vector.load %arg4[%c0_4, %c0_5] : memref<8x128xf32, #tpu.memory_space<vmem>>, vector<8x128xf32>
    %7 = arith.mulf %4, %4 : vector<64x128xf32>
    %8 = vector.shape_cast %7 : vector<64x128xf32> to vector<8x8x128xf32>
    %cst = arith.constant dense<0.000000e+00> : vector<8x128xf32>
    %9 = vector.multi_reduction <add>, %8, %cst [0] : vector<8x8x128xf32> to vector<8x128xf32>
    %10 = arith.addf %6, %9 : vector<8x128xf32>
    %c0_6 = arith.constant 0 : index
    %c0_7 = arith.constant 0 : index
    %11 = vector.load %arg4[%c0_6, %c0_7] : memref<8x128xf32, #tpu.memory_space<vmem>>, vector<8x128xf32>
    tpu.vector_store %arg4[%c0_6, %c0_7], %10 {strides = array<i32>} : memref<8x128xf32, #tpu.memory_space<vmem>>, vector<8x128xf32>,
    %c0_8 = arith.constant 0 : index
    %c0_9 = arith.constant 0 : index
    %12 = vector.load %arg5[%c0_8, %c0_9] : memref<8x128xf32, #tpu.memory_space<vmem>>, vector<8x128xf32>
    %13 = arith.mulf %5, %5 : vector<64x128xf32>
    %14 = vector.shape_cast %13 : vector<64x128xf32> to vector<8x8x128xf32>
    %cst_10 = arith.constant dense<0.000000e+00> : vector<8x128xf32>
    %15 = vector.multi_reduction <add>, %14, %cst_10 [0] : vector<8x8x128xf32> to vector<8x128xf32>
    %16 = arith.addf %12, %15 : vector<8x128xf32>
    %c0_11 = arith.constant 0 : index
    %c0_12 = arith.constant 0 : index
    %17 = vector.load %arg5[%c0_11, %c0_12] : memref<8x128xf32, #tpu.memory_space<vmem>>, vector<8x128xf32>
    tpu.vector_store %arg5[%c0_11, %c0_12], %16 {strides = array<i32>} : memref<8x128xf32, #tpu.memory_space<vmem>>, vector<8x128xf32>,
    %c0_13 = arith.constant 0 : index
    %c0_14 = arith.constant 0 : index
    %18 = vector.load %arg6[%c0_13, %c0_14] : memref<8x128xf32, #tpu.memory_space<vmem>>, vector<8x128xf32>
    %19 = vector.shape_cast %5 : vector<64x128xf32> to vector<8x8x128xf32>
    %cst_15 = arith.constant dense<0.000000e+00> : vector<8x128xf32>
    %20 = vector.multi_reduction <add>, %19, %cst_15 [0] : vector<8x8x128xf32> to vector<8x128xf32>
    %21 = arith.addf %18, %20 : vector<8x128xf32>
    %c0_16 = arith.constant 0 : index
    %c0_17 = arith.constant 0 : index
    %22 = vector.load %arg6[%c0_16, %c0_17] : memref<8x128xf32, #tpu.memory_space<vmem>>, vector<8x128xf32>
    tpu.vector_store %arg6[%c0_16, %c0_17], %21 {strides = array<i32>} : memref<8x128xf32, #tpu.memory_space<vmem>>, vector<8x128xf32>,
    %c0_i32_18 = arith.constant 0 : i32
    %23 = arith.cmpi eq, %arg0, %c0_i32_18 : i32
    %24 = arith.extui %23 : i1 to i32
    %c0_i32_19 = arith.constant 0 : i32
    %25 = arith.cmpi ne, %24, %c0_i32_19 : i32
    scf.if %25 {
      %c0_20 = arith.constant 0 : index
      %c0_21 = arith.constant 0 : index
      %26 = vector.load %arg4[%c0_20, %c0_21] : memref<8x128xf32, #tpu.memory_space<vmem>>, vector<8x128xf32>
      %27 = vector.shape_cast %26 : vector<8x128xf32> to vector<1x8x128xf32>
      %cst_22 = arith.constant dense<0.000000e+00> : vector<1xf32>
      %28 = vector.multi_reduction <add>, %27, %cst_22 [1, 2] : vector<1x8x128xf32> to vector<1xf32>
      %29 = vector.shape_cast %28 : vector<1xf32> to vector<1x1x1xf32>
      %30 = vector.extract %29[0, 0, 0] : f32 from vector<1x1x1xf32>
      %cst_23 = arith.constant 1.22070313E-4 : f32
      %31 = arith.mulf %30, %cst_23 : f32
      %cst_24 = arith.constant 9.99999974E-6 : f32
      %32 = arith.addf %31, %cst_24 : f32
      %cst_25 = arith.constant 1.000000e+00 : f32
      %33 = arith.divf %cst_25, %32 : f32
      %c0_26 = arith.constant 0 : index
      %c0_27 = arith.constant 0 : index
      %34 = vector.load %arg5[%c0_26, %c0_27] : memref<8x128xf32, #tpu.memory_space<vmem>>, vector<8x128xf32>
      %35 = vector.shape_cast %34 : vector<8x128xf32> to vector<1x8x128xf32>
      %cst_28 = arith.constant dense<0.000000e+00> : vector<1xf32>
      %36 = vector.multi_reduction <add>, %35, %cst_28 [1, 2] : vector<1x8x128xf32> to vector<1xf32>
      %37 = vector.shape_cast %36 : vector<1xf32> to vector<1x1x1xf32>
      %38 = vector.extract %37[0, 0, 0] : f32 from vector<1x1x1xf32>
      %cst_29 = arith.constant 1.22070313E-4 : f32
      %39 = arith.mulf %38, %cst_29 : f32
      %40 = arith.mulf %39, %33 : f32
      %c0_30 = arith.constant 0 : index
      %c0_31 = arith.constant 0 : index
      %41 = vector.load %arg6[%c0_30, %c0_31] : memref<8x128xf32, #tpu.memory_space<vmem>>, vector<8x128xf32>
      %cst_32 = arith.constant dense<0.000000e+00> : vector<128xf32>
      %42 = vector.multi_reduction <add>, %41, %cst_32 [0] : vector<8x128xf32> to vector<128xf32>
      %43 = vector.shape_cast %42 : vector<128xf32> to vector<1x128xf32>
      %c2_i32 = arith.constant 2 : i32
      %44 = tpu.dynamic_rotate %43 by %c2_i32 dim 1 : vector<1x128xf32>, i32 -> vector<1x128xf32>
      %45 = arith.addf %43, %44 : vector<1x128xf32>
      %c4_i32 = arith.constant 4 : i32
      %46 = tpu.dynamic_rotate %45 by %c4_i32 dim 1 : vector<1x128xf32>, i32 -> vector<1x128xf32>
      %47 = arith.addf %45, %46 : vector<1x128xf32>
      %c8_i32 = arith.constant 8 : i32
      %48 = tpu.dynamic_rotate %47 by %c8_i32 dim 1 : vector<1x128xf32>, i32 -> vector<1x128xf32>
      %49 = arith.addf %47, %48 : vector<1x128xf32>
      %c16_i32 = arith.constant 16 : i32
      %50 = tpu.dynamic_rotate %49 by %c16_i32 dim 1 : vector<1x128xf32>, i32 -> vector<1x128xf32>
      %51 = arith.addf %49, %50 : vector<1x128xf32>
      %c32_i32 = arith.constant 32 : i32
      %52 = tpu.dynamic_rotate %51 by %c32_i32 dim 1 : vector<1x128xf32>, i32 -> vector<1x128xf32>
      %53 = arith.addf %51, %52 : vector<1x128xf32>
      %c64_i32 = arith.constant 64 : i32
      %54 = tpu.dynamic_rotate %53 by %c64_i32 dim 1 : vector<1x128xf32>, i32 -> vector<1x128xf32>
      %55 = arith.addf %53, %54 : vector<1x128xf32>
      %56 = arith.mulf %43, %55 : vector<1x128xf32>
      %57 = vector.shape_cast %56 : vector<1x128xf32> to vector<1x1x128xf32>
      %cst_33 = arith.constant dense<0.000000e+00> : vector<1xf32>
      %58 = vector.multi_reduction <add>, %57, %cst_33 [1, 2] : vector<1x1x128xf32> to vector<1xf32>
      %59 = vector.shape_cast %58 : vector<1xf32> to vector<1x1x1xf32>
      %60 = vector.extract %59[0, 0, 0] : f32 from vector<1x1x1xf32>
      %cst_34 = arith.constant 5.96046448E-8 : f32
      %61 = arith.mulf %60, %cst_34 : f32
      %cst_35 = arith.constant 5.000000e-01 : f32
      %62 = arith.mulf %61, %cst_35 : f32
      %63 = arith.mulf %62, %33 : f32
      %cst_36 = arith.constant 7.500000e-01 : f32
      %64 = arith.mulf %cst_36, %40 : f32
      %cst_37 = arith.constant 2.500000e-01 : f32
      %65 = arith.mulf %cst_37, %63 : f32
      %66 = arith.addf %64, %65 : f32
      %c0_38 = arith.constant 0 : index
      %c0_39 = arith.constant 0 : index
      %67 = memref.load %arg3[%c0_38, %c0_39] : memref<1x1xf32, #tpu.memory_space<smem>>
      memref.store %66, %arg3[%c0_38, %c0_39] : memref<1x1xf32, #tpu.memory_space<smem>>
    } else {
    }
    return
  }
  func.func @transform_0(%arg0: i32) -> (i32, i32) {
    %c0_i32 = arith.constant 0 : i32
    %c0_i32_0 = arith.constant 0 : i32
    return %arg0, %c0_i32 : i32, i32
  }
  func.func @transform_1(%arg0: i32) -> (i32, i32) {
    %c0_i32 = arith.constant 0 : i32
    %c0_i32_0 = arith.constant 0 : i32
    return %arg0, %c0_i32 : i32, i32
  }
  func.func @transform_2(%arg0: i32) -> (i32, i32) {
    %c0_i32 = arith.constant 0 : i32
    %c0_i32_0 = arith.constant 0 : i32
    %c0_i32_1 = arith.constant 0 : i32
    return %c0_i32, %c0_i32_0 : i32, i32
  }
}

</mosaic_0001>

<llo_original>
// kernel: tpu_custom_call.1
$region0: #{tpu_custom_call.1}
  #allocation0 [shape = 'u32[]', space=smem, size = 0x4, offset = 0x4, fixed_abs, tag = 'smem constant byte address 0x4 - core index']
  #allocation1 [shape = 'u32[144,128]{1,0:T(1,128)}', space=vmem, size = 0x12000, scoped, tag = 'internal scratch']
  #allocation2 [shape = 'f32[8,128]{1,0:T(8,128)}', space=vmem, size = 0x1000, scoped, tag = 'scratch operand']
  #allocation3 [shape = 'f32[8,128]{1,0:T(8,128)}', space=vmem, size = 0x1000, scoped, tag = 'scratch operand']
  #allocation4 [shape = 'f32[8,128]{1,0:T(8,128)}', space=vmem, size = 0x1000, scoped, tag = 'scratch operand']
  %s0 = inlined_call_operand.hbm [shape: f32[64,128], index: 0, kind: input, shape index: {}]
  %s1 = inlined_call_operand.hbm [shape: f32[64,128], index: 1, kind: input, shape index: {}]
  %s2 = inlined_call_operand.hbm [shape: f32[1,1], index: 2, kind: output, shape index: {}]
  %s3 = sld [smem:[#allocation0]]
  $region34: #{tpu_custom_call.1} parent=0
    _
  %s5 = ssub.s32 1, %s3
  %s6 = scalar_select 0, %s5, %s3
  $region1: #{tpu_custom_call.1} parent=0
    #allocation5 [shape = 'u8[32768]{0}', space=vmem, size = 0x8000, scoped, tag = 'input window, operand 0, single buffered']
    #allocation6 [shape = 's32[1]{0}', space=sflag, size = 0x4, scoped, tag = 'scoped memory for tpu_custom_call.1']
    #allocation7 [shape = 's32[1]{0}', space=sflag, size = 0x4, scoped, tag = 'scoped memory for tpu_custom_call.1']
    #allocation8 [shape = 'u8[32768]{0}', space=vmem, size = 0x8000, scoped, tag = 'input window, operand 1, single buffered']
    #allocation9 [shape = 's32[1]{0}', space=sflag, size = 0x4, scoped, tag = 'scoped memory for tpu_custom_call.1']
    #allocation10 [shape = 'u8[512]{0}', space=smem, size = 0x200, scoped, tag = 'output window, operand 0, single buffered']
    %7 = vsyncpa [#allocation6], 0
    %8 = vsyncpa [#allocation9], 0
    %9 = vsyncpa [#allocation7], 0
    // Predicated region
    $region2: #{tpu_custom_call.1} parent=1 // pred_check
      _
    $region3: #{tpu_custom_call.1} parent=1 // pred_check_branch
      %11 = sbr.rel (0) target = $region5
    $region4: #{tpu_custom_call.1} parent=1 // pred_region
      %s13 = ssub.s32 1024, 1024
      %14 = vsyncadd [#allocation6], %s13
      %s15 = sshll.u32 [#allocation5], 4
      %s16 = int_to_ptr.vmem [resolvable:$true] %s15
      %21 = dma.hbm_to_vmem [thread:$0]  %s0, 1024, %s16, [#allocation6], 128, 128, 8
    $region5: #{tpu_custom_call.1} parent=1 // pred_fallthru
      _
    // Predicated region
    $region6: #{tpu_custom_call.1} parent=1 // pred_check
      _
    $region7: #{tpu_custom_call.1} parent=1 // pred_check_branch
      %23 = sbr.rel (0) target = $region9
    $region8: #{tpu_custom_call.1} parent=1 // pred_region
      %s25 = ssub.s32 1024, 1024
      %26 = vsyncadd [#allocation9], %s25
      %s27 = sshll.u32 [#allocation8], 4
      %s28 = int_to_ptr.vmem [resolvable:$true] %s27
      %33 = dma.hbm_to_vmem [thread:$0]  %s1, 1024, %s28, [#allocation9], 128, 128, 8
    $region9: #{tpu_custom_call.1} parent=1 // pred_fallthru
      _
    // Predicated region
    $region10: #{tpu_custom_call.1} parent=1 // pred_check
      _
    $region11: #{tpu_custom_call.1} parent=1 // pred_check_branch
      %35 = sbr.rel (0) target = $region13
    $region12: #{tpu_custom_call.1} parent=1 // pred_region
      %36 = dma.done [#allocation6], 1024
    $region13: #{tpu_custom_call.1} parent=1 // pred_fallthru
      _
    // Predicated region
    $region14: #{tpu_custom_call.1} parent=1 // pred_check
      _
    $region15: #{tpu_custom_call.1} parent=1 // pred_check_branch
      %38 = sbr.rel (0) target = $region17
    $region16: #{tpu_custom_call.1} parent=1 // pred_region
      %39 = dma.done [#allocation9], 1024
    $region17: #{tpu_custom_call.1} parent=1 // pred_fallthru
      _
    %p40 = scmp.eq.s32.totalorder 0, 0
    // Predicated region
    $region18: #{tpu_custom_call.1} parent=1 // pred_check
      %p41 = pneg %p40
    $region19: #{tpu_custom_call.1} parent=1 // pred_check_branch
      %43 = sbr.rel (%p41) target = $region21
    $region20: #{tpu_custom_call.1} parent=1 // pred_region
      %44 = vst [vmem:[#allocation2] sm:$0xff] 0.0
      %45 = vst [vmem:[#allocation3] sm:$0xff] 0.0
      %46 = vst [vmem:[#allocation4] sm:$0xff] 0.0
    $region21: #{tpu_custom_call.1} parent=1 // pred_fallthru
      _
    %v47 = vld [vmem:[#allocation5] sm:$0xff]
    %v48 = vld [vmem:[#allocation5 + $0x8] sm:$0xff]
    %v49 = vld [vmem:[#allocation5 + $0x10] sm:$0xff]
    %v50 = vld [vmem:[#allocation5 + $0x18] sm:$0xff]
    %v51 = vld [vmem:[#allocation5 + $0x20] sm:$0xff]
    %v52 = vld [vmem:[#allocation5 + $0x28] sm:$0xff]
    %v53 = vld [vmem:[#allocation5 + $0x30] sm:$0xff]
    %v54 = vld [vmem:[#allocation5 + $0x38] sm:$0xff]
    %v55 = vld [vmem:[#allocation8] sm:$0xff]
    %v56 = vld [vmem:[#allocation8 + $0x8] sm:$0xff]
    %v57 = vld [vmem:[#allocation8 + $0x10] sm:$0xff]
    %v58 = vld [vmem:[#allocation8 + $0x18] sm:$0xff]
    %v59 = vld [vmem:[#allocation8 + $0x20] sm:$0xff]
    %v60 = vld [vmem:[#allocation8 + $0x28] sm:$0xff]
    %v61 = vld [vmem:[#allocation8 + $0x30] sm:$0xff]
    %v62 = vld [vmem:[#allocation8 + $0x38] sm:$0xff]
    %v63 = vsub.f32 %v55, %v47
    %v64 = vsub.f32 %v56, %v48
    %v65 = vsub.f32 %v57, %v49
    %v66 = vsub.f32 %v58, %v50
    %v67 = vsub.f32 %v59, %v51
    %v68 = vsub.f32 %v60, %v52
    %v69 = vsub.f32 %v61, %v53
    %v70 = vsub.f32 %v62, %v54
    %v71 = vld [vmem:[#allocation2] sm:$0xff]
    %v72 = vmul.f32 %v55, %v55
    %v73 = vmul.f32 %v56, %v56
    %v74 = vmul.f32 %v57, %v57
    %v75 = vmul.f32 %v58, %v58
    %v76 = vmul.f32 %v59, %v59
    %v77 = vmul.f32 %v60, %v60
    %v78 = vmul.f32 %v61, %v61
    %v79 = vmul.f32 %v62, %v62
    %v80 = vadd.f32 %v72, %v73
    %v81 = vadd.f32 %v80, %v74
    %v82 = vadd.f32 %v81, %v75
    %v83 = vadd.f32 %v82, %v76
    %v84 = vadd.f32 %v83, %v77
    %v85 = vadd.f32 %v84, %v78
    %v86 = vadd.f32 %v85, %v79
    %v87 = vadd.f32 %v71, %v86
    %88 = vst [vmem:[#allocation2] sm:$0xff] %v87
    %v89 = vld [vmem:[#allocation3] sm:$0xff]
    %v90 = vmul.f32 %v63, %v63
    %v91 = vmul.f32 %v64, %v64
    %v92 = vmul.f32 %v65, %v65
    %v93 = vmul.f32 %v66, %v66
    %v94 = vmul.f32 %v67, %v67
    %v95 = vmul.f32 %v68, %v68
    %v96 = vmul.f32 %v69, %v69
    %v97 = vmul.f32 %v70, %v70
    %v98 = vadd.f32 %v90, %v91
    %v99 = vadd.f32 %v98, %v92
    %v100 = vadd.f32 %v99, %v93
    %v101 = vadd.f32 %v100, %v94
    %v102 = vadd.f32 %v101, %v95
    %v103 = vadd.f32 %v102, %v96
    %v104 = vadd.f32 %v103, %v97
    %v105 = vadd.f32 %v89, %v104
    %106 = vst [vmem:[#allocation3] sm:$0xff] %v105
    %v107 = vld [vmem:[#allocation4] sm:$0xff]
    %v108 = vadd.f32 %v63, %v64
    %v109 = vadd.f32 %v108, %v65
    %v110 = vadd.f32 %v109, %v66
    %v111 = vadd.f32 %v110, %v67
    %v112 = vadd.f32 %v111, %v68
    %v113 = vadd.f32 %v112, %v69
    %v114 = vadd.f32 %v113, %v70
    %v115 = vadd.f32 %v107, %v114
    %116 = vst [vmem:[#allocation4] sm:$0xff] %v115
    // Predicated region
    $region22: #{tpu_custom_call.1} parent=1 // pred_check
      %p117 = pneg %p40
    $region23: #{tpu_custom_call.1} parent=1 // pred_check_branch
      %119 = sbr.rel (%p117) target = $region25
    $region24: #{tpu_custom_call.1} parent=1 // pred_region
      %v120 = vld [vmem:[#allocation2] sm:$0xff]
      %121 = vadd.xlane.f32.xlu0 %v120
      %v122 = vpop.xlane.xlu0 %121
      %v123 = vrot.slane %v122, 4
      %v124 = vadd.f32 %v122, %v123
      %v125 = vrot.slane %v124, 2
      %v126 = vadd.f32 %v124, %v125
      %v127 = vrot.slane %v126, 1
      %v128 = vadd.f32 %v126, %v127
      %s129 = vtos %v128
      %s130 = smul.f32 %s129, 0.00012207031
      %s131 = sadd.f32 %s130, 1e-05
      %v132 = vstv %s131
      %v133 = vrcp.pop %v132
      %s134 = vtos %v133
      %v135 = vld [vmem:[#allocation3] sm:$0xff]
      %136 = vadd.xlane.f32.xlu0 %v135
      %v137 = vpop.xlane.xlu0 %136
      %v138 = vrot.slane %v137, 4
      %v139 = vadd.f32 %v137, %v138
      %v140 = vrot.slane %v139, 2
      %v141 = vadd.f32 %v139, %v140
      %v142 = vrot.slane %v141, 1
      %v143 = vadd.f32 %v141, %v142
      %s144 = vtos %v143
      %s145 = smul.f32 %s144, 0.00012207031
      %s146 = smul.f32 %s145, %s134
      %v147 = vld [vmem:[#allocation4] sm:$0xff]
      %v148 = vrot.slane %v147, 4
      %v149 = vadd.f32 %v147, %v148
      %v150 = vrot.slane %v149, 2
      %v151 = vadd.f32 %v149, %v150
      %v152 = vrot.slane %v151, 1
      %v153 = vadd.f32 %v151, %v152
      %154 = vrot.lane.b32.xlu0 %v153, 2
      %v155 = vpop.permute.xlu0 %154
      %v156 = vadd.f32 %v153, %v155
      %157 = vrot.lane.b32.xlu0 %v156, 4
      %v158 = vpop.permute.xlu0 %157
      %v159 = vadd.f32 %v156, %v158
      %160 = vrot.lane.b32.xlu0 %v159, 8
      %v161 = vpop.permute.xlu0 %160
      %v162 = vadd.f32 %v159, %v161
      %163 = vrot.lane.b32.xlu0 %v162, 16
      %v164 = vpop.permute.xlu0 %163
      %v165 = vadd.f32 %v162, %v164
      %166 = vrot.lane.b32.xlu0 %v165, 32
      %v167 = vpop.permute.xlu0 %166
      %v168 = vadd.f32 %v165, %v167
      %169 = vrot.lane.b32.xlu0 %v168, 64
      %v170 = vpop.permute.xlu0 %169
      %v171 = vadd.f32 %v168, %v170
      %v172 = vmul.f32 %v153, %v171
      %vm173 = vcmask 1040384
      %v174 = vsel %vm173, %v172, 0.0
      %175 = vadd.xlane.f32.xlu0 %v174
      %v176 = vpop.xlane.xlu0 %175
      %v177 = vrot.slane %v176, 4
      %v178 = vadd.f32 %v176, %v177
      %v179 = vrot.slane %v178, 2
      %v180 = vadd.f32 %v178, %v179
      %v181 = vrot.slane %v180, 1
      %v182 = vadd.f32 %v180, %v181
      %s183 = vtos %v182
      %s184 = smul.f32 %s183, 5.9604645e-08
      %s185 = smul.f32 %s184, 0.5
      %s186 = smul.f32 %s185, %s134
      %s187 = smul.f32 %s146, 0.75
      %s188 = smul.f32 %s186, 0.25
      %s189 = sadd.f32 %s187, %s188
      %s190 = scalar_lea.smem [#allocation10], 0
      %191 = sst [smem:[%s190]] %s189
    $region25: #{tpu_custom_call.1} parent=1 // pred_fallthru
      _
    // Predicated region
    $region26: #{tpu_custom_call.1} parent=1 // pred_check
      _
    $region27: #{tpu_custom_call.1} parent=1 // pred_check_branch
      %193 = sbr.rel (0) target = $region29
    $region28: #{tpu_custom_call.1} parent=1 // pred_region
      %s195 = ssub.s32 16, 16
      %196 = vsyncadd [#allocation7], %s195
      %199 = dma.smem_to_hbm [#allocation10], 16, %s2, [#allocation7]
    $region29: #{tpu_custom_call.1} parent=1 // pred_fallthru
      _
    // Predicated region
    $region30: #{tpu_custom_call.1} parent=1 // pred_check
      _
    $region31: #{tpu_custom_call.1} parent=1 // pred_check_branch
      %201 = sbr.rel (0) target = $region33
    $region32: #{tpu_custom_call.1} parent=1 // pred_region
      %202 = dma.done [#allocation7], 16
    $region33: #{tpu_custom_call.1} parent=1 // pred_fallthru
      _
    %203 = sfence
    %204 = vsyncpa [#allocation6], 1
    %205 = vsyncpa [#allocation9], 1
    %206 = vsyncpa [#allocation7], 1

</llo_original>
